<compile_context>
chip_gen: v7x
topology: tpu7x:2x2x1
jax: 0.10.0
libtpu: 0.0.40
codegen_flags: <defaults>
</compile_context>

<pallas_src>
import jax
import jax.numpy as jnp
from jax import lax
from jax.experimental import pallas as pl
from jax.experimental.pallas import tpu as pltpu

_MiB = 1024 * 1024


def _vmem_capacity_bytes():
    """Physical VMEM per TensorCore; conservative fallback if the query is unavailable."""
    try:
        cap = int(getattr(pltpu.get_tpu_info(), "vmem_capacity_bytes", 0))
        if cap > 0:
            return cap
    except Exception:
        pass
    return 64 * _MiB  # v7x per-core size; safe lower bound for v5e/v6e as well


def _vmem_budget_bytes(cap):
    """Generation-aware budget for the double-buffered x/out blocks."""
    if cap >= 96 * _MiB:                      # v5e / v6e: 128 MiB physical VMEM
        return 72 * _MiB
    return min(44 * _MiB, (cap * 3) // 4)     # v7x: 64 MiB per TensorCore


def _pick_batch_tile(n, per_batch_io_bytes, budget_bytes, weight_bytes, max_batch_tile):
    """Largest divisor of n that fits the VMEM budget and keeps the grid >= 2 steps
    (so v7x can spread the 'parallel' batch axis over both TensorCores).  Using divisors
    avoids both batch-padding waste and ragged last tiles."""
    max_by_vmem = max(1, (budget_bytes - weight_bytes) // max(per_batch_io_bytes, 1))
    if max_batch_tile is not None:
        max_by_vmem = min(max_by_vmem, max_batch_tile)
    best = 1
    for d in range(1, n + 1):
        if n % d != 0 or d > max_by_vmem:
            continue
        if n // d >= 2 or n == 1:
            best = d
    return best


def _make_kernel(batch_tile, slab_bytes, inv_l):
    """slab_bytes: per-batch (C, L) f32 block size; selects unroll vs fori_loop."""

    def kernel(x_ref, w1_ref, b1_ref, w2_ref, b2_ref, o_ref):
        # Loaded once per grid step; constant index maps mean a single HBM fetch overall.
        w1 = w1_ref[...]          # (C, C) f32, BN + conv1 bias folded in
        b1 = b1_ref[...]          # (C, 1) f32, folded
        w2 = w2_ref[...]          # (C, C) f32
        b2 = b2_ref[...]          # (C, 1) f32

        def one_batch(b):
            xb = x_ref[b]                                             # (C, L) f32
            # 1x1 conv + folded BN.  f32 matmul: kernel is HBM-bound, MXU has slack.
            y = jnp.dot(w1, xb, preferred_element_type=jnp.float32) + b1
            y = jnp.maximum(y, 0.0)                                   # ReLU
            # AdaptiveAvgPool1d(1): exact mean over the true length (no padded lanes).
            pooled = jnp.sum(y, axis=-1, keepdims=True) * inv_l       # (C, 1)
            # Gate conv + sigmoid (tiny, hidden under the DMA of the next block).
            z = jnp.dot(w2, pooled, preferred_element_type=jnp.float32) + b2
            gate = jax.nn.sigmoid(z)                                  # (C, 1)
            # Scale the ORIGINAL input.
            o_ref[b] = (xb * gate).astype(o_ref.dtype)

        if batch_tile == 1:
            one_batch(0)
        elif batch_tile <= 8 and slab_bytes <= 256 * 1024:
            # Small slabs: static unroll amortizes loop overhead; live ranges stay tiny.
            for b in range(batch_tile):
                one_batch(b)
        else:
            # Large slabs: a visible loop bounds live ranges (avoids vreg spills).
            def body(b, carry):
                one_batch(b)
                return carry
            lax.fori_loop(0, batch_tile, body, 0)

    return kernel


def channel_attention(x, params, *, eps=1e-5, max_batch_tile=None):
    """x: (N, C, L) float32.  params: raw module parameters (see make_params)."""
    N, C, L = x.shape

    # ---- Fold BatchNorm (inference running stats) + first-conv bias into conv1 ----
    # TODO(synk): train-mode BN (batch statistics) would need a cross-batch reduction pass.
    bn_scale = params["gamma"] / jnp.sqrt(params["running_var"] + eps)   # (C, 1)
    bn_shift = params["beta"] - params["running_mean"] * bn_scale        # (C, 1)
    w1f = (bn_scale * params["w1"]).astype(x.dtype)                      # (C, C)
    b1f = (bn_scale * params["b1"] + bn_shift).astype(x.dtype)           # (C, 1)
    w2 = params["w2"].astype(x.dtype)                                    # (C, C)
    b2 = params["b2"].astype(x.dtype)                                    # (C, 1)

    # ---- Generation-aware VMEM sizing & batch-tile selection ----
    cap = _vmem_capacity_bytes()
    budget = _vmem_budget_bytes(cap)
    itemsize = jnp.dtype(x.dtype).itemsize
    slab_bytes = C * L * itemsize
    per_batch_io = 2 * 2 * slab_bytes                       # (x in + out) x double-buffered
    weight_bytes = 2 * (2 * C * C + 2 * C) * itemsize       # double-buffered param blocks
    tb = _pick_batch_tile(N, per_batch_io, budget, weight_bytes, max_batch_tile)
    # TODO(synk): if even tb == 1 exceeds the budget (huge C*L), switch to an L-tiled
    # two-pass variant (gate pass with partial sums, then streaming x*gate).

    est_vmem = tb * per_batch_io + weight_bytes + 2 * _MiB  # + slack for compiler scratch
    # Always set the scoped-VMEM limit (v5e's default is ~16 MiB and would reject big blocks).
    vmem_limit = int(min(max(int(1.25 * est_vmem), 32 * _MiB), int(0.9 * cap)))

    kernel = _make_kernel(tb, slab_bytes, 1.0 / float(L))

    grid = (N // tb,)
    # Full C / L block dims: no HBM padding, no output slice, minimal traffic.
    x_spec = pl.BlockSpec((tb, C, L), lambda t: (t, 0, 0))
    w_spec = pl.BlockSpec((C, C), lambda t: (0, 0))          # constant map -> fetched once
    b_spec = pl.BlockSpec((C, 1), lambda t: (0, 0))

    return pl.pallas_call(
        kernel,
        out_shape=jax.ShapeDtypeStruct((N, C, L), x.dtype),
        grid_spec=pltpu.PrefetchScalarGridSpec(
            num_scalar_prefetch=0,
            grid=grid,
            in_specs=[x_spec, w_spec, b_spec, w_spec, b_spec],
            out_specs=x_spec,
        ),
        # Output may reuse x's HBM buffer when the caller donates it; otherwise XLA inserts
        # a copy (still correct).
        input_output_aliases={0: 0},
        compiler_params=pltpu.CompilerParams(
            dimension_semantics=("parallel",),
            vmem_limit_bytes=vmem_limit,
        ),
    )(x, w1f, b1f, w2, b2)


def make_params(key, channels):
    """Deterministic synthetic parameters matching the PyTorch module shapes (raw, unfolded)."""
    k1, k2, k3, k4, k5, k6, k7, k8 = jax.random.split(key, 8)
    C = channels
    w1 = jax.random.normal(k1, (C, C), jnp.float32) * 0.1    # Conv1d(C,C,1) weight, k squeezed
    b1 = jax.random.normal(k2, (C, 1), jnp.float32) * 0.1
    gamma = 1.0 + 0.1 * jax.random.normal(k3, (C, 1), jnp.float32)
    beta = 0.1 * jax.random.normal(k4, (C, 1), jnp.float32)
    running_mean = 0.1 * jax.random.normal(k5, (C, 1), jnp.float32)
    running_var = jnp.abs(1.0 + 0.1 * jax.random.normal(k6, (C, 1), jnp.float32))
    w2 = jax.random.normal(k7, (C, C), jnp.float32) * 0.1
    b2 = jax.random.normal(k8, (C, 1), jnp.float32) * 0.1
    return dict(w1=w1, b1=b1, gamma=gamma, beta=beta,
                running_mean=running_mean, running_var=running_var, w2=w2, b2=b2)


def channel_attention_ref(x, p, eps=1e-5):
    """Module math in f32: conv1x1 -> BN(inference) -> ReLU -> GAP(1) -> conv1x1 -> sigmoid -> scale."""
    hp = lax.Precision.HIGHEST
    y = jnp.einsum("oc,ncl->nol", p["w1"], x, precision=hp) + p["b1"][None]
    y = (y - p["running_mean"][None]) * (
        p["gamma"][None] / jnp.sqrt(p["running_var"][None] + eps)) + p["beta"][None]
    y = jnp.maximum(y, 0.0)
    pooled = jnp.mean(y, axis=-1, keepdims=True)
    z = jnp.einsum("oc,ncl->nol", p["w2"], pooled, precision=hp) + p["b2"][None]
    return x * jax.nn.sigmoid(z)


if __name__ == "__main__":
    key = jax.random.PRNGKey(0)
    kx, kp = jax.random.split(key)

    N, C, L = 2, 4, 16
    x = jax.random.normal(kx, (N, C, L), jnp.float32)
    params = make_params(kp, C)

    # Compute the reference first (x is not needed after the aliased pallas_call).
    ref = channel_attention_ref(x, params)

    out = jax.block_until_ready(channel_attention(x, params))
    assert out.shape == (N, C, L)
    assert bool(jnp.all(jnp.isfinite(out)))
    # Kernel is f32 end to end; tolerance covers the MXU's internal f32-matmul rounding.
    assert jnp.allclose(out, ref, atol=2e-3, rtol=2e-3), "mismatch vs f32 module reference"

    print("KERNEL_OK")
</pallas_src>

<mosaic_0001>
module attributes {stable_mosaic.version = 11 : i64} {
  func.func @kernel(%arg0: i32, %arg1: memref<1x4x16xf32, #tpu.memory_space<vmem>>, %arg2: memref<4x4xf32, #tpu.memory_space<vmem>>, %arg3: memref<4x1xf32, #tpu.memory_space<vmem>>, %arg4: memref<4x4xf32, #tpu.memory_space<vmem>>, %arg5: memref<4x1xf32, #tpu.memory_space<vmem>>, %arg6: memref<1x4x16xf32, #tpu.memory_space<vmem>>) attributes {dimension_semantics = [#tpu.dimension_semantics<parallel>], iteration_bounds = array<i64: 2>, scalar_prefetch = 0 : i64, scratch_operands = 0 : i64, tpu.core_type = #tpu.core_type<tc>, window_params = [{transform_indices = @transform_0, window_bounds = array<i64: 1, 4, 16>}, {pipeline_mode = #tpu.pipeline_mode<synchronous>, transform_indices = @transform_1, window_bounds = array<i64: 4, 4>}, {pipeline_mode = #tpu.pipeline_mode<synchronous>, transform_indices = @transform_2, window_bounds = array<i64: 4, 1>}, {pipeline_mode = #tpu.pipeline_mode<synchronous>, transform_indices = @transform_3, window_bounds = array<i64: 4, 4>}, {pipeline_mode = #tpu.pipeline_mode<synchronous>, transform_indices = @transform_4, window_bounds = array<i64: 4, 1>}, {transform_indices = @transform_5, window_bounds = array<i64: 1, 4, 16>}]} {
    %c0 = arith.constant 0 : index
    %c0_0 = arith.constant 0 : index
    %0 = vector.load %arg2[%c0, %c0_0] : memref<4x4xf32, #tpu.memory_space<vmem>>, vector<4x4xf32>
    %c0_1 = arith.constant 0 : index
    %c0_2 = arith.constant 0 : index
    %1 = vector.load %arg3[%c0_1, %c0_2] : memref<4x1xf32, #tpu.memory_space<vmem>>, vector<4x1xf32>
    %c0_3 = arith.constant 0 : index
    %c0_4 = arith.constant 0 : index
    %2 = vector.load %arg4[%c0_3, %c0_4] : memref<4x4xf32, #tpu.memory_space<vmem>>, vector<4x4xf32>
    %c0_5 = arith.constant 0 : index
    %c0_6 = arith.constant 0 : index
    %3 = vector.load %arg5[%c0_5, %c0_6] : memref<4x1xf32, #tpu.memory_space<vmem>>, vector<4x1xf32>
    %c0_7 = arith.constant 0 : index
    %c0_8 = arith.constant 0 : index
    %c0_9 = arith.constant 0 : index
    %4 = vector.load %arg1[%c0_7, %c0_8, %c0_9] : memref<1x4x16xf32, #tpu.memory_space<vmem>>, vector<1x4x16xf32>
    %5 = vector.shape_cast %4 : vector<1x4x16xf32> to vector<4x16xf32>
    %cst = arith.constant dense<0.000000e+00> : vector<4x16xf32>
    %6 = tpu.matmul %0, %5, %cst {dimension_numbers = #tpu.dot_dimension_numbers<[1], [0], [0], [1], [0, 0, 1, 1], [], []>} : vector<4x4xf32>, vector<4x16xf32>, vector<4x16xf32> -> vector<4x16xf32>
    %7 = vector.broadcast %1 : vector<4x1xf32> to vector<4x16xf32>
    %8 = arith.addf %6, %7 : vector<4x16xf32>
    %cst_10 = arith.constant 0.000000e+00 : f32
    %9 = vector.broadcast %cst_10 : f32 to vector<4x16xf32>
    %10 = arith.maximumf %8, %9 : vector<4x16xf32>
    %cst_11 = arith.constant dense<0.000000e+00> : vector<4xf32>
    %11 = vector.multi_reduction <add>, %10, %cst_11 [1] : vector<4x16xf32> to vector<4xf32>
    %12 = vector.shape_cast %11 : vector<4xf32> to vector<4x1xf32>
    %cst_12 = arith.constant 6.250000e-02 : f32
    %13 = vector.broadcast %cst_12 : f32 to vector<4x1xf32>
    %14 = arith.mulf %12, %13 : vector<4x1xf32>
    %cst_13 = arith.constant dense<0.000000e+00> : vector<4x1xf32>
    %15 = tpu.matmul %2, %14, %cst_13 {dimension_numbers = #tpu.dot_dimension_numbers<[1], [0], [0], [1], [0, 0, 1, 1], [], []>} : vector<4x4xf32>, vector<4x1xf32>, vector<4x1xf32> -> vector<4x1xf32>
    %16 = arith.addf %15, %3 : vector<4x1xf32>
    %17 = arith.negf %16 : vector<4x1xf32>
    %18 = math.exp %17 : vector<4x1xf32>
    %cst_14 = arith.constant 1.000000e+00 : f32
    %19 = vector.broadcast %cst_14 : f32 to vector<4x1xf32>
    %20 = arith.addf %19, %18 : vector<4x1xf32>
    %21 = arith.divf %19, %20 : vector<4x1xf32>
    %22 = vector.broadcast %21 : vector<4x1xf32> to vector<4x16xf32>
    %23 = arith.mulf %5, %22 : vector<4x16xf32>
    %c0_15 = arith.constant 0 : index
    %c0_16 = arith.constant 0 : index
    %c0_17 = arith.constant 0 : index
    %24 = vector.load %arg6[%c0_15, %c0_16, %c0_17] : memref<1x4x16xf32, #tpu.memory_space<vmem>>, vector<1x4x16xf32>
    %25 = vector.shape_cast %24 : vector<1x4x16xf32> to vector<4x16xf32>
    %26 = vector.shape_cast %23 : vector<4x16xf32> to vector<1x4x16xf32>
    tpu.vector_store %arg6[%c0_15, %c0_16, %c0_17], %26 {strides = array<i32>} : memref<1x4x16xf32, #tpu.memory_space<vmem>>, vector<1x4x16xf32>,
    return
  }
  func.func @transform_0(%arg0: i32) -> (i32, i32, i32) {
    %c0_i32 = arith.constant 0 : i32
    %c0_i32_0 = arith.constant 0 : i32
    %c0_i32_1 = arith.constant 0 : i32
    return %arg0, %c0_i32, %c0_i32_0 : i32, i32, i32
  }
  func.func @transform_1(%arg0: i32) -> (i32, i32) {
    %c0_i32 = arith.constant 0 : i32
    %c0_i32_0 = arith.constant 0 : i32
    %c0_i32_1 = arith.constant 0 : i32
    return %c0_i32, %c0_i32_0 : i32, i32
  }
  func.func @transform_2(%arg0: i32) -> (i32, i32) {
    %c0_i32 = arith.constant 0 : i32
    %c0_i32_0 = arith.constant 0 : i32
    %c0_i32_1 = arith.constant 0 : i32
    return %c0_i32, %c0_i32_0 : i32, i32
  }
  func.func @transform_3(%arg0: i32) -> (i32, i32) {
    %c0_i32 = arith.constant 0 : i32
    %c0_i32_0 = arith.constant 0 : i32
    %c0_i32_1 = arith.constant 0 : i32
    return %c0_i32, %c0_i32_0 : i32, i32
  }
  func.func @transform_4(%arg0: i32) -> (i32, i32) {
    %c0_i32 = arith.constant 0 : i32
    %c0_i32_0 = arith.constant 0 : i32
    %c0_i32_1 = arith.constant 0 : i32
    return %c0_i32, %c0_i32_0 : i32, i32
  }
  func.func @transform_5(%arg0: i32) -> (i32, i32, i32) {
    %c0_i32 = arith.constant 0 : i32
    %c0_i32_0 = arith.constant 0 : i32
    %c0_i32_1 = arith.constant 0 : i32
    return %arg0, %c0_i32, %c0_i32_0 : i32, i32, i32
  }
}

</mosaic_0001>

<llo_original>
// kernel: tpu_custom_call.1
$region0: #{tpu_custom_call.1}
  #allocation0 [shape = 'u32[]', space=smem, size = 0x4, offset = 0x4, fixed_abs, tag = 'smem constant byte address 0x4 - core index']
  #allocation1 [shape = 'u32[144,128]{1,0:T(1,128)}', space=vmem, size = 0x12000, scoped, tag = 'internal scratch']
  %s0 = inlined_call_operand.hbm [shape: f32[2,4,16], index: 0, kind: input, shape index: {}, may-alias: {0,5}]
  %s1 = inlined_call_operand.vmem [shape: f32[4,4], index: 1, kind: input, shape index: {}]
  %s2 = inlined_call_operand.vmem [shape: f32[4,1], index: 2, kind: input, shape index: {}]
  %s3 = inlined_call_operand.vmem [shape: f32[4,4], index: 3, kind: input, shape index: {}]
  %s4 = inlined_call_operand.vmem [shape: f32[4,1], index: 4, kind: input, shape index: {}]
  %s5 = inlined_call_operand.hbm [shape: f32[2,4,16], index: 5, kind: output, shape index: {}, may-alias: {0,5}]
  %s6 = sld [smem:[#allocation0]]
  $region57: #{tpu_custom_call.1} parent=0
    _
  %s8 = ssub.s32 1, %s6
  %s9 = scalar_select 0, %s8, %s6
  $region1: #{tpu_custom_call.1} parent=0
    #allocation2 [shape = 'u8[4096]{0}', space=vmem, size = 0x1000, scoped, tag = 'input window, operand 0']
    #allocation3 [shape = 's32[2]{0}', space=sflag, size = 0x8, scoped, tag = 'scoped memory for tpu_custom_call.1']
    #allocation4 [shape = 's32[2]{0}', space=sflag, size = 0x8, scoped, tag = 'scoped memory for tpu_custom_call.1']
    #allocation5 [shape = 'u8[4096]{0}', space=vmem, size = 0x1000, scoped, tag = 'output window, operand 0']
    %10 = vsyncpa [#allocation3], 0
    %s11 = scalar_lea.sflag [#allocation3], 1
    %12 = vsyncpa %s11, 0
    %13 = vsyncpa [#allocation4], 0
    %s14 = scalar_lea.sflag [#allocation4], 1
    %15 = vsyncpa %s14, 0
    loop: start=0, step=1, limit=4
    $region2: #{tpu_custom_call.1} parent=1 // loop_pre_header
      _
    $region3: #{tpu_custom_call.1} parent=1 // loop_header
      %s17 = sphi 0, %s21
      %p18 = scmp.ge.s32.totalorder %s17, 4
      %s27 = sphi 0, %s29
      %s30 = sphi 0, %s27
      %s31 = sphi 0, %s30
      %s47 = sphi 0, %s31
      %s51 = sphi 0, %s51
      %s53 = sphi 0, %s51
      %s54 = sphi 0, %s53
      %s68 = sphi 0, %s54
      %s72 = sphi 0, %s72
      %s74 = sphi 0, %s72
      %s75 = sphi 0, %s74
      %s89 = sphi 0, %s75
      %s93 = sphi 0, %s93
      %s95 = sphi 0, %s93
      %s96 = sphi 0, %s95
      %s110 = sphi 0, %s96
      %s114 = sphi 0, %s114
      %s116 = sphi 0, %s114
      %s117 = sphi 0, %s116
      %s131 = sphi 0, %s117
      %s137 = sphi 0, %s139
      %s140 = sphi 0, %s137
      %s141 = sphi 0, %s140
      %s157 = sphi 0, %s141
    $region4: #{tpu_custom_call.1} parent=1 // loop_header_branch
      %20 = sbr.rel (%p18) target = $region8
    $region5: #{tpu_custom_call.1} parent=1 // loop_body
      %s22 = ssub.s32 %s17, 1
      %s23 = ssub.s32 %s17, 2
      %s24 = sadd.s32 %s17, 1
      %s25 = ssub.s32 %s17, %s24
      %p26 = scmp.eq.s32.totalorder %s25, 0
      %s28 = sadd.s32 %s27, 1
      %s29 = scalar_select %p26, %s27, %s28
      %p32 = pneg %p26
      %p33 = scmp.eq.s32.totalorder %s17, 1
      %p34 = por %p32, %p33
      %p35 = scmp.ne.s32.totalorder %s27, %s30
      %p36 = scmp.eq.s32.totalorder %s17, 0
      %p37 = por %p35, %p36
      %p38 = scmp.ne.s32.totalorder %s27, %s30
      %p39 = scmp.eq.s32.totalorder %s22, 1
      %p40 = por %p38, %p39
      %p41 = scmp.ne.s32.totalorder %s30, %s31
      %p42 = scmp.eq.s32.totalorder %s22, 0
      %p43 = por %p41, %p42
      %p44 = scmp.ne.s32.totalorder %s30, %s31
      %p45 = scmp.eq.s32.totalorder %s23, 1
      %p46 = por %p44, %p45
      %p48 = scmp.ne.s32.totalorder %s31, %s47
      %p49 = scmp.eq.s32.totalorder %s23, 0
      %p50 = por %p48, %p49
      %s52 = sadd.s32 %s51, 1
      %p55 = scmp.eq.s32.totalorder %s17, 1
      %p56 = scmp.ne.s32.totalorder %s51, %s53
      %p57 = scmp.eq.s32.totalorder %s17, 0
      %p58 = por %p56, %p57
      %p59 = scmp.ne.s32.totalorder %s51, %s53
      %p60 = scmp.eq.s32.totalorder %s22, 1
      %p61 = por %p59, %p60
      %p62 = scmp.ne.s32.totalorder %s53, %s54
      %p63 = scmp.eq.s32.totalorder %s22, 0
      %p64 = por %p62, %p63
      %p65 = scmp.ne.s32.totalorder %s53, %s54
      %p66 = scmp.eq.s32.totalorder %s23, 1
      %p67 = por %p65, %p66
      %p69 = scmp.ne.s32.totalorder %s54, %s68
      %p70 = scmp.eq.s32.totalorder %s23, 0
      %p71 = por %p69, %p70
      %s73 = sadd.s32 %s72, 1
      %p76 = scmp.eq.s32.totalorder %s17, 1
      %p77 = scmp.ne.s32.totalorder %s72, %s74
      %p78 = scmp.eq.s32.totalorder %s17, 0
      %p79 = por %p77, %p78
      %p80 = scmp.ne.s32.totalorder %s72, %s74
      %p81 = scmp.eq.s32.totalorder %s22, 1
      %p82 = por %p80, %p81
      %p83 = scmp.ne.s32.totalorder %s74, %s75
      %p84 = scmp.eq.s32.totalorder %s22, 0
      %p85 = por %p83, %p84
      %p86 = scmp.ne.s32.totalorder %s74, %s75
      %p87 = scmp.eq.s32.totalorder %s23, 1
      %p88 = por %p86, %p87
      %p90 = scmp.ne.s32.totalorder %s75, %s89
      %p91 = scmp.eq.s32.totalorder %s23, 0
      %p92 = por %p90, %p91
      %s94 = sadd.s32 %s93, 1
      %p97 = scmp.eq.s32.totalorder %s17, 1
      %p98 = scmp.ne.s32.totalorder %s93, %s95
      %p99 = scmp.eq.s32.totalorder %s17, 0
      %p100 = por %p98, %p99
      %p101 = scmp.ne.s32.totalorder %s93, %s95
      %p102 = scmp.eq.s32.totalorder %s22, 1
      %p103 = por %p101, %p102
      %p104 = scmp.ne.s32.totalorder %s95, %s96
      %p105 = scmp.eq.s32.totalorder %s22, 0
      %p106 = por %p104, %p105
      %p107 = scmp.ne.s32.totalorder %s95, %s96
      %p108 = scmp.eq.s32.totalorder %s23, 1
      %p109 = por %p107, %p108
      %p111 = scmp.ne.s32.totalorder %s96, %s110
      %p112 = scmp.eq.s32.totalorder %s23, 0
      %p113 = por %p111, %p112
      %s115 = sadd.s32 %s114, 1
      %p118 = scmp.eq.s32.totalorder %s17, 1
      %p119 = scmp.ne.s32.totalorder %s114, %s116
      %p120 = scmp.eq.s32.totalorder %s17, 0
      %p121 = por %p119, %p120
      %p122 = scmp.ne.s32.totalorder %s114, %s116
      %p123 = scmp.eq.s32.totalorder %s22, 1
      %p124 = por %p122, %p123
      %p125 = scmp.ne.s32.totalorder %s116, %s117
      %p126 = scmp.eq.s32.totalorder %s22, 0
      %p127 = por %p125, %p126
      %p128 = scmp.ne.s32.totalorder %s116, %s117
      %p129 = scmp.eq.s32.totalorder %s23, 1
      %p130 = por %p128, %p129
      %p132 = scmp.ne.s32.totalorder %s117, %s131
      %p133 = scmp.eq.s32.totalorder %s23, 0
      %p134 = por %p132, %p133
      %s135 = ssub.s32 %s17, %s24
      %p136 = scmp.eq.s32.totalorder %s135, 0
      %s138 = sadd.s32 %s137, 1
      %s139 = scalar_select %p136, %s137, %s138
      %p142 = pneg %p136
      %p143 = scmp.eq.s32.totalorder %s17, 1
      %p144 = por %p142, %p143
      %p145 = scmp.ne.s32.totalorder %s137, %s140
      %p146 = scmp.eq.s32.totalorder %s17, 0
      %p147 = por %p145, %p146
      %p148 = scmp.ne.s32.totalorder %s137, %s140
      %p149 = scmp.eq.s32.totalorder %s22, 1
      %p150 = por %p148, %p149
      %p151 = scmp.ne.s32.totalorder %s140, %s141
      %p152 = scmp.eq.s32.totalorder %s22, 0
      %p153 = por %p151, %p152
      %p154 = scmp.ne.s32.totalorder %s140, %s141
      %p155 = scmp.eq.s32.totalorder %s23, 1
      %p156 = por %p154, %p155
      %p158 = scmp.ne.s32.totalorder %s141, %s157
      %p159 = scmp.eq.s32.totalorder %s23, 0
      %p160 = por %p158, %p159
      %p161 = scmp.le.s32.totalorder 1, %s17
      %p162 = scmp.lt.s32.totalorder %s17, 3
      %p163 = pnand %p161, %p162
      %p164 = pneg %p163
      // Predicated region
      $region9: #{tpu_custom_call.1} parent=5 // pred_check
        _
      $region10: #{tpu_custom_call.1} parent=5 // pred_check_branch
        %166 = sbr.rel (%p163) target = $region12
      $region11: #{tpu_custom_call.1} parent=5 // pred_region
        %s167 = ssub.s32 %s17, 1
        // Predicated region
        $region13: #{tpu_custom_call.1} parent=11 // pred_check
          %p168 = pneg %p64
        $region14: #{tpu_custom_call.1} parent=11 // pred_check_branch
          %170 = sbr.rel (%p168) target = $region16
        $region15: #{tpu_custom_call.1} parent=11 // pred_region
          _
        $region16: #{tpu_custom_call.1} parent=11 // pred_fallthru
          _
        // Predicated region
        $region17: #{tpu_custom_call.1} parent=11 // pred_check
          %p171 = pneg %p85
        $region18: #{tpu_custom_call.1} parent=11 // pred_check_branch
          %173 = sbr.rel (%p171) target = $region20
        $region19: #{tpu_custom_call.1} parent=11 // pred_region
          _
        $region20: #{tpu_custom_call.1} parent=11 // pred_fallthru
          _
        // Predicated region
        $region21: #{tpu_custom_call.1} parent=11 // pred_check
          %p174 = pneg %p106
        $region22: #{tpu_custom_call.1} parent=11 // pred_check_branch
          %176 = sbr.rel (%p174) target = $region24
        $region23: #{tpu_custom_call.1} parent=11 // pred_region
          _
        $region24: #{tpu_custom_call.1} parent=11 // pred_fallthru
          _
        // Predicated region
        $region25: #{tpu_custom_call.1} parent=11 // pred_check
          %p177 = pneg %p127
        $region26: #{tpu_custom_call.1} parent=11 // pred_check_branch
          %179 = sbr.rel (%p177) target = $region28
        $region27: #{tpu_custom_call.1} parent=11 // pred_region
          _
        $region28: #{tpu_custom_call.1} parent=11 // pred_fallthru
          _
      $region12: #{tpu_custom_call.1} parent=5 // pred_fallthru
        _
      %p180 = scmp.lt.s32.totalorder %s17, 2
      // Predicated region
      $region29: #{tpu_custom_call.1} parent=5 // pred_check
        %p181 = pneg %p180
      $region30: #{tpu_custom_call.1} parent=5 // pred_check_branch
        %183 = sbr.rel (%p181) target = $region32
      $region31: #{tpu_custom_call.1} parent=5 // pred_region
        // Predicated region
        $region33: #{tpu_custom_call.1} parent=31 // pred_check
          %p184 = pneg %p37
        $region34: #{tpu_custom_call.1} parent=31 // pred_check_branch
          %186 = sbr.rel (%p184) target = $region36
        $region35: #{tpu_custom_call.1} parent=31 // pred_region
          %s187 = sand.u32 %s27, 1
          %s188 = scalar_lea.sflag [#allocation3], %s187
          %s189 = sand.u32 %s27, 1
          %s190 = smul.addr %s189, 4
          %s191 = scalar_lea.vmem [#allocation2], %s190
          %s193 = ssub.s32 64, 64
          %194 = vsyncadd %s188, %s193
          %s195 = smul.addr %s17, 64
          %s196 = scalar_lea.hbm %s0, %s195
          %s198 = sshll.u32 %s191, 4
          %s199 = int_to_ptr.vmem [resolvable:$true] %s198
          %201 = dma.hbm_to_vmem [thread:$0]  %s196, 64, %s199, %s188
        $region36: #{tpu_custom_call.1} parent=31 // pred_fallthru
          _
      $region32: #{tpu_custom_call.1} parent=5 // pred_fallthru
        _
      %p202 = scmp.le.s32.totalorder 1, %s17
      %p203 = scmp.lt.s32.totalorder %s17, 3
      %p204 = pnand %p202, %p203
      %p205 = pneg %p204
      // Predicated region
      $region37: #{tpu_custom_call.1} parent=5 // pred_check
        _
      $region38: #{tpu_custom_call.1} parent=5 // pred_check_branch
        %207 = sbr.rel (%p204) target = $region40
      $region39: #{tpu_custom_call.1} parent=5 // pred_region
        %s208 = ssub.s32 %s17, 1
        %s209 = sand.u32 %s30, 1
        %s210 = scalar_lea.sflag [#allocation3], %s209
        %s211 = sand.u32 %s30, 1
        %s212 = smul.addr %s211, 4
        %s213 = scalar_lea.vmem [#allocation2], %s212
        // Predicated region
        $region41: #{tpu_custom_call.1} parent=39 // pred_check
          %p214 = pneg %p43
        $region42: #{tpu_custom_call.1} parent=39 // pred_check_branch
          %216 = sbr.rel (%p214) target = $region44
        $region43: #{tpu_custom_call.1} parent=39 // pred_region
          %217 = dma.done %s210, 64
        $region44: #{tpu_custom_call.1} parent=39 // pred_fallthru
          _
        %s218 = sand.u32 %s30, 1
        %s219 = scalar_lea.sflag [#allocation3], %s218
        %s220 = sand.u32 %s30, 1
        %s221 = smul.addr %s220, 4
        %s222 = scalar_lea.vmem [#allocation2], %s221
        %p223 = pneg %p43
        %p224 = pneg %p40
        %p225 = pneg %p64
        %p226 = pneg %p61
        %p227 = pneg %p85
        %p228 = pneg %p82
        %p229 = pneg %p106
        %p230 = pneg %p103
        %p231 = pneg %p127
        %p232 = pneg %p124
        %p233 = pneg %p153
        %p234 = pneg %p150
        %s235 = sand.u32 %s140, 1
        %s236 = scalar_lea.sflag [#allocation4], %s235
        %s237 = sand.u32 %s140, 1
        %s238 = smul.addr %s237, 4
        %s239 = scalar_lea.vmem [#allocation5], %s238
        %v240 = vld [vmem:[%s1] sm:$0xf]
        %v241 = vld [vmem:[%s2] sm:$0xf]
        %v242 = vld [vmem:[%s3] sm:$0xf]
        %v243 = vld [vmem:[%s4] sm:$0xf]
        %v244 = vld [vmem:[%s213] sm:$0xf]
        %246 = vset.pattern.permute.xlu0 0
        %247 = vperm.xlu0 %246, %v241
        %v248 = vpop.permute.xlu0 %247
        %vm250 = vcmask 31744
        %v252 = vsel %vm250, %v240, 0
        %vm254 = vcmask 1043456
        %v256 = vsel %vm254, %v244, 0
        %258 = vmatprep.subr.mxu0 0.0
        %259 = vmatpush1.msra.mxu0 %v256
        %260 = vmatprep.subr.mxu0 0.0
        %261 = vmatpush1.msra.mxu0 0.0
        %262 = vmatprep.subr.mxu0 0.0
        %263 = vmatpush1.msra.mxu0 0.0
        %264 = vmatprep.subr.mxu0 0.0
        %265 = vmatpush1.msra.mxu0 0.0
        %266 = vmatprep.subr.mxu0 0.0
        %267 = vmatpush1.msra.mxu0 0.0
        %268 = vmatprep.subr.mxu0 0.0
        %269 = vmatpush1.msra.mxu0 0.0
        %270 = vmatprep.subr.mxu0 0.0
        %271 = vmatpush1.msra.mxu0 0.0
        %272 = vmatprep.subr.mxu0 0.0
        %273 = vmatpush1.msra.mxu0 0.0
        %274 = vmatprep.subr.mxu0 0.0
        %275 = vmatpush1.msra.mxu0 0.0
        %276 = vmatprep.subr.mxu0 0.0
        %277 = vmatpush1.msra.mxu0 0.0
        %278 = vmatprep.subr.mxu0 0.0
        %279 = vmatpush1.msra.mxu0 0.0
        %280 = vmatprep.subr.mxu0 0.0
        %281 = vmatpush1.msra.mxu0 0.0
        %282 = vmatprep.subr.mxu0 0.0
        %283 = vmatpush1.msra.mxu0 0.0
        %284 = vmatprep.subr.mxu0 0.0
        %285 = vmatpush1.msra.mxu0 0.0
        %286 = vmatprep.subr.mxu0 0.0
        %287 = vmatpush1.msra.mxu0 0.0
        %288 = vmatprep.subr.mxu0 0.0
        %289 = vmatpush1.msra.mxu0 0.0
        %290 = vmatprep.subr.mxu0 0.0
        %291 = vmatpush1.msra.mxu0 0.0
        %292 = vmatprep.subr.mxu0 0.0
        %293 = vmatpush1.msra.mxu0 0.0
        %294 = vmatprep.subr.mxu0 0.0
        %295 = vmatpush1.msra.mxu0 0.0
        %296 = vmatprep.subr.mxu0 0.0
        %297 = vmatpush1.msra.mxu0 0.0
        %298 = vmatprep.subr.mxu0 0.0
        %299 = vmatpush1.msra.mxu0 0.0
        %300 = vmatprep.subr.mxu0 0.0
        %301 = vmatpush1.msra.mxu0 0.0
        %302 = vmatprep.subr.mxu0 0.0
        %303 = vmatpush1.msra.mxu0 0.0
        %304 = vmatprep.subr.mxu0 0.0
        %305 = vmatpush1.msra.mxu0 0.0
        %306 = vmatprep.subr.mxu0 0.0
        %307 = vmatpush1.msra.mxu0 0.0
        %308 = vmatprep.subr.mxu0 0.0
        %309 = vmatpush1.msra.mxu0 0.0
        %310 = vmatprep.subr.mxu0 0.0
        %311 = vmatpush1.msra.mxu0 0.0
        %312 = vmatprep.subr.mxu0 0.0
        %313 = vmatpush1.msra.mxu0 0.0
        %314 = vmatprep.subr.mxu0 0.0
        %315 = vmatpush1.msra.mxu0 0.0
        %316 = vmatprep.subr.mxu0 0.0
        %317 = vmatpush1.msra.mxu0 0.0
        %318 = vmatprep.subr.mxu0 0.0
        %319 = vmatpush1.msra.mxu0 0.0
        %320 = vmatprep.subr.mxu0 0.0
        %321 = vmatpush1.msra.mxu0 0.0
        %322 = vmatprep.mubr.f32.mxu0 0.0
        %323 = vmatmul.mubr.f32.gmra.mrb[0].mxu0 %v252
        %v324 = vpop.f32.mrb[0].mxu0
        %v325 = vadd.f32 %v248, %v324
        %v326 = vpop.f32.mrb[0].mxu0
        %327 = vdwg.mxu0
        %v328 = vmax.f32 %v325, 0.0
        %vm329 = vcmask 125952
        %v330 = vsel %vm329, %v328, 0.0
        %331 = vadd.xlane.f32.xlu0 %v330
        %v332 = vpop.xlane.xlu0 %331
        %v333 = vmul.f32 %v332, 0.0625
        %v335 = vsel %vm250, %v242, 0
        %v338 = vsel %vm254, %v333, 0
        %340 = vmatprep.subr.mxu0 0.0
        %341 = vmatpush1.msra.mxu0 %v338
        %342 = vmatprep.subr.mxu0 0.0
        %343 = vmatpush1.msra.mxu0 0.0
        %344 = vmatprep.subr.mxu0 0.0
        %345 = vmatpush1.msra.mxu0 0.0
        %346 = vmatprep.subr.mxu0 0.0
        %347 = vmatpush1.msra.mxu0 0.0
        %348 = vmatprep.subr.mxu0 0.0
        %349 = vmatpush1.msra.mxu0 0.0
        %350 = vmatprep.subr.mxu0 0.0
        %351 = vmatpush1.msra.mxu0 0.0
        %352 = vmatprep.subr.mxu0 0.0
        %353 = vmatpush1.msra.mxu0 0.0
        %354 = vmatprep.subr.mxu0 0.0
        %355 = vmatpush1.msra.mxu0 0.0
        %356 = vmatprep.subr.mxu0 0.0
        %357 = vmatpush1.msra.mxu0 0.0
        %358 = vmatprep.subr.mxu0 0.0
        %359 = vmatpush1.msra.mxu0 0.0
        %360 = vmatprep.subr.mxu0 0.0
        %361 = vmatpush1.msra.mxu0 0.0
        %362 = vmatprep.subr.mxu0 0.0
        %363 = vmatpush1.msra.mxu0 0.0
        %364 = vmatprep.subr.mxu0 0.0
        %365 = vmatpush1.msra.mxu0 0.0
        %366 = vmatprep.subr.mxu0 0.0
        %367 = vmatpush1.msra.mxu0 0.0
        %368 = vmatprep.subr.mxu0 0.0
        %369 = vmatpush1.msra.mxu0 0.0
        %370 = vmatprep.subr.mxu0 0.0
        %371 = vmatpush1.msra.mxu0 0.0
        %372 = vmatprep.subr.mxu0 0.0
        %373 = vmatpush1.msra.mxu0 0.0
        %374 = vmatprep.subr.mxu0 0.0
        %375 = vmatpush1.msra.mxu0 0.0
        %376 = vmatprep.subr.mxu0 0.0
        %377 = vmatpush1.msra.mxu0 0.0
        %378 = vmatprep.subr.mxu0 0.0
        %379 = vmatpush1.msra.mxu0 0.0
        %380 = vmatprep.subr.mxu0 0.0
        %381 = vmatpush1.msra.mxu0 0.0
        %382 = vmatprep.subr.mxu0 0.0
        %383 = vmatpush1.msra.mxu0 0.0
        %384 = vmatprep.subr.mxu0 0.0
        %385 = vmatpush1.msra.mxu0 0.0
        %386 = vmatprep.subr.mxu0 0.0
        %387 = vmatpush1.msra.mxu0 0.0
        %388 = vmatprep.subr.mxu0 0.0
        %389 = vmatpush1.msra.mxu0 0.0
        %390 = vmatprep.subr.mxu0 0.0
        %391 = vmatpush1.msra.mxu0 0.0
        %392 = vmatprep.subr.mxu0 0.0
        %393 = vmatpush1.msra.mxu0 0.0
        %394 = vmatprep.subr.mxu0 0.0
        %395 = vmatpush1.msra.mxu0 0.0
        %396 = vmatprep.subr.mxu0 0.0
        %397 = vmatpush1.msra.mxu0 0.0
        %398 = vmatprep.subr.mxu0 0.0
        %399 = vmatpush1.msra.mxu0 0.0
        %400 = vmatprep.subr.mxu0 0.0
        %401 = vmatpush1.msra.mxu0 0.0
        %402 = vmatprep.subr.mxu0 0.0
        %403 = vmatpush1.msra.mxu0 0.0
        %404 = vmatprep.mubr.f32.mxu0 0.0
        %405 = vmatmul.mubr.f32.gmra.mrb[0].mxu0 %v335
        %v406 = vpop.f32.mrb[0].mxu0
        %v407 = vadd.f32 %v243, %v406
        %v408 = vpop.f32.mrb[0].mxu0
        %409 = vdwg.mxu0
        %v410 = vxor.u32 %v407, 2147483648
        %v411 = vmul.f32 %v410, 1.442695
        %v412 = vpow.pop %v411
        %v413 = vadd.f32 %v412, 1.0
        %v414 = vrcp.pop %v413
        %v415 = vmul.f32 1.0, %v414
        %417 = vset.pattern.permute.xlu0 0
        %418 = vperm.xlu0 %417, %v415
        %v419 = vpop.permute.xlu0 %418
        %v421 = vmul.f32 %v244, %v419
        %422 = vst.msk [vmem:[%s239] sm:$0xf] %vm329, %v421
        %s423 = sand.u32 %s140, 1
        %s424 = scalar_lea.sflag [#allocation4], %s423
        %s425 = sand.u32 %s140, 1
        %s426 = smul.addr %s425, 4
        %s427 = scalar_lea.vmem [#allocation5], %s426
        // Predicated region
        $region45: #{tpu_custom_call.1} parent=39 // pred_check
          %p428 = pneg %p150
        $region46: #{tpu_custom_call.1} parent=39 // pred_check_branch
          %430 = sbr.rel (%p428) target = $region48
        $region47: #{tpu_custom_call.1} parent=39 // pred_region
          %s432 = ssub.s32 64, 64
          %433 = vsyncadd %s424, %s432
          %s434 = smul.addr %s22, 64
          %s435 = scalar_lea.hbm %s5, %s434
          %s437 = sshll.u32 %s427, 4
          %s438 = int_to_ptr.vmem [resolvable:$true] %s437
          %440 = dma.vmem_to_hbm [thread:$0]  %s438, 64, %s435, %s424
        $region48: #{tpu_custom_call.1} parent=39 // pred_fallthru
          _
      $region40: #{tpu_custom_call.1} parent=5 // pred_fallthru
        _
      %p441 = scmp.le.s32.totalorder 2, %s17
      // Predicated region
      $region49: #{tpu_custom_call.1} parent=5 // pred_check
        %p442 = pneg %p441
      $region50: #{tpu_custom_call.1} parent=5 // pred_check_branch
        %444 = sbr.rel (%p442) target = $region52
      $region51: #{tpu_custom_call.1} parent=5 // pred_region
        %s445 = ssub.s32 %s17, 2
        // Predicated region
        $region53: #{tpu_custom_call.1} parent=51 // pred_check
          %p446 = pneg %p156
        $region54: #{tpu_custom_call.1} parent=51 // pred_check_branch
          %448 = sbr.rel (%p446) target = $region56
        $region55: #{tpu_custom_call.1} parent=51 // pred_region
          %s449 = sand.u32 %s141, 1
          %s450 = scalar_lea.sflag [#allocation4], %s449
          %s451 = sand.u32 %s141, 1
          %s452 = smul.addr %s451, 4
          %s453 = scalar_lea.vmem [#allocation5], %s452
          %454 = dma.done %s450, 64
        $region56: #{tpu_custom_call.1} parent=51 // pred_fallthru
          _
      $region52: #{tpu_custom_call.1} parent=5 // pred_fallthru
        _
    $region6: #{tpu_custom_call.1} parent=1 // loop_footer
      %s21 = sadd.s32 1, %s17
    $region7: #{tpu_custom_call.1} parent=1 // loop_footer_branch
      %16 = sbr.rel target = $region3
    $region8: #{tpu_custom_call.1} parent=1 // loop_exit
      _
    %455 = vsyncpa [#allocation3], 1
    %s456 = scalar_lea.sflag [#allocation3], 1
    %457 = vsyncpa %s456, 1
    %458 = vsyncpa [#allocation4], 1
    %s459 = scalar_lea.sflag [#allocation4], 1
    %460 = vsyncpa %s459, 1

</llo_original>
